<compile_context>
chip_gen: v6e
topology: v6e:2x2x1
jax: 0.10.0
libtpu: 0.0.40
codegen_flags: <defaults>
</compile_context>

<pallas_src>
import functools

import jax
import jax.numpy as jnp
from jax.experimental import pallas as pl
from jax.experimental.pallas import tpu as pltpu


def _maxpool_stride1_kernel(x_ref, right_ref, bottom_ref, o_ref, *, H, W):
    # x_ref / o_ref: (B, L=H*W) lane-dense blocks (one row per (n, c) plane).
    # right_ref / bottom_ref: (1, L) int32 edge masks (1 at the edge, else 0).
    x = x_ref[...]
    l = x_ref.shape[1]

    m = x
    if W > 1:
        # Right neighbor x[h, min(w+1, W-1)]: roll-left-by-1 over the flattened
        # plane (x_r[p] = x[(p + 1) % l]), then restore the wrapped last column
        # to x (replicate right edge).  Mask is (1, L) -> broadcasts over B.
        right = right_ref[...] != 0
        x_r = pltpu.roll(x, shift=l - 1, axis=1)
        x_r = jnp.where(right, x, x_r)
        m = jnp.maximum(m, x_r)
    if H > 1:
        # Bottom neighbor of the row-max m[min(h+1, H-1), w]: roll-left-by-W,
        # then restore the wrapped last row to m (replicate bottom edge).
        bottom = bottom_ref[...] != 0
        m_d = pltpu.roll(m, shift=l - W, axis=1)   # m_d[p] = m[(p + W) % l]
        m_d = jnp.where(bottom, m, m_d)
        m = jnp.maximum(m, m_d)
    o_ref[...] = m


def _sublane_tile(itemsize):
    # Rows pack along sublanes for sub-32-bit dtypes: 8 (f32), 16 (bf16), 32 (i8).
    return max(8, 32 // max(1, itemsize))


def _tpu_defaults():
    """(target block bytes, vmem_limit_bytes, min grid steps) per TPU generation."""
    kind = ""
    try:
        kind = jax.devices()[0].device_kind.lower()
    except Exception:
        pass
    if "v7" in kind or "7x" in kind:
        # v7x: 3.2 TB/s/TC -> big blocks to hide the ~0.35 us/step overhead, but
        # only 64 MiB physical VMEM; 2 TCs -> keep >= 4 grid steps for megacore.
        return 8 << 20, 48 * 1024 * 1024, 4
    if "v6" in kind:
        return 4 << 20, 32 * 1024 * 1024, 1
    # v5e and unknown chips: 2 MiB blocks already keep step overhead < 7%.
    return 2 << 20, 32 * 1024 * 1024, 1


def _planes_per_block(P, L, itemsize, target_bytes, min_steps):
    """Planes per grid block: multiple of the dtype sublane tile (or == P),
    near the per-generation VMEM sweet spot, with >= min_steps grid steps."""
    sub = _sublane_tile(itemsize)
    if P <= sub:
        return P                          # equals full dim -> satisfies (8,128) rule
    full = (P // sub) * sub               # largest sublane-aligned B <= P
    fit = max(sub, (int(target_bytes // (L * itemsize)) // sub) * sub)
    if min_steps > 1 and P >= min_steps * sub:
        # Cap B so the grid has at least `min_steps` steps (2 TCs on v7x).
        cap = ((pl.cdiv(P, min_steps) + sub - 1) // sub) * sub
        fit = min(fit, cap)
    return min(fit, full)
    # TODO(synk): for planes so large that even `sub` planes per block exceed the
    # VMEM budget (f32 planes >~512x512 on v7x), tile H inside the plane with a
    # 1-row halo instead of whole-plane blocks.


def max_pool_stride1(x, donate_input=False):
    """Equivalent of F.max_pool2d(F.pad(x, (0,1,0,1), mode='replicate'), 2, stride=1).

    x: (N, C, H, W) -> (N, C, H, W), same dtype.
    """
    N, C, H, W = x.shape
    P, L = N * C, H * W
    itemsize = jnp.dtype(x.dtype).itemsize

    target_bytes, vmem_limit, min_steps = _tpu_defaults()
    B = _planes_per_block(P, L, itemsize, target_bytes, min_steps)
    grid = (pl.cdiv(P, B),)

    x2 = x.reshape(P, L)
    # Precomputed (1, L) edge masks (replace in-kernel int32 div/mod); they use
    # a constant block index so they are DMA'd only once, not per grid step.
    lane = jnp.arange(L, dtype=jnp.int32)
    right_edge = (lane % W == W - 1).astype(jnp.int32).reshape(1, L)
    bottom_edge = (lane >= (H - 1) * W).astype(jnp.int32).reshape(1, L)

    kernel = functools.partial(_maxpool_stride1_kernel, H=H, W=W)

    out2 = pl.pallas_call(
        kernel,
        out_shape=jax.ShapeDtypeStruct((P, L), x.dtype),
        grid_spec=pltpu.PrefetchScalarGridSpec(
            num_scalar_prefetch=0,
            grid=grid,
            in_specs=[
                pl.BlockSpec((B, L), lambda i: (i, 0)),
                pl.BlockSpec((1, L), lambda i: (0, 0)),
                pl.BlockSpec((1, L), lambda i: (0, 0)),
            ],
            out_specs=pl.BlockSpec((B, L), lambda i: (i, 0)),
        ),
        compiler_params=pltpu.CompilerParams(
            dimension_semantics=("parallel",),
            vmem_limit_bytes=vmem_limit,
        ),
        cost_estimate=pl.CostEstimate(
            flops=5 * P * L,                                   # 3 max + 2 select per elem
            transcendentals=0,
            bytes_accessed=2 * P * L * itemsize + 2 * L * 4,   # x in, out, masks
        ),
        input_output_aliases=({0: 0} if donate_input else {}),
    )(x2, right_edge, bottom_edge)

    return out2.reshape(N, C, H, W)


def _reference(x):
    # Pure-JAX reference of the PyTorch forward.
    xp = jnp.pad(x, ((0, 0), (0, 0), (0, 1), (0, 1)), mode="edge")
    a = xp[:, :, :-1, :-1]
    b = xp[:, :, :-1, 1:]
    c = xp[:, :, 1:, :-1]
    d = xp[:, :, 1:, 1:]
    return jnp.maximum(jnp.maximum(a, b), jnp.maximum(c, d))


if __name__ == "__main__":
    key = jax.random.PRNGKey(0)
    x = jax.random.normal(key, (2, 4, 16, 16), dtype=jnp.float32)

    out = jax.block_until_ready(max_pool_stride1(x))

    ref = _reference(x)
    assert out.shape == x.shape and out.dtype == x.dtype
    assert jnp.allclose(out, ref), "mismatch vs reference"
    print("KERNEL_OK")
</pallas_src>

<mosaic_0001>
module attributes {stable_mosaic.version = 11 : i64} {
  func.func @_maxpool_stride1_kernel(%arg0: i32, %arg1: memref<8x256xf32, #tpu.memory_space<vmem>>, %arg2: memref<1x256xi32, #tpu.memory_space<vmem>>, %arg3: memref<1x256xi32, #tpu.memory_space<vmem>>, %arg4: memref<8x256xf32, #tpu.memory_space<vmem>>) attributes {dimension_semantics = [#tpu.dimension_semantics<parallel>], iteration_bounds = array<i64: 1>, scalar_prefetch = 0 : i64, scratch_operands = 0 : i64, tpu.core_type = #tpu.core_type<tc>, window_params = [{transform_indices = @transform_0, window_bounds = array<i64: 8, 256>}, {pipeline_mode = #tpu.pipeline_mode<synchronous>, transform_indices = @transform_1, window_bounds = array<i64: 1, 256>}, {pipeline_mode = #tpu.pipeline_mode<synchronous>, transform_indices = @transform_2, window_bounds = array<i64: 1, 256>}, {transform_indices = @transform_3, window_bounds = array<i64: 8, 256>}]} {
    %c0 = arith.constant 0 : index
    %c0_0 = arith.constant 0 : index
    %0 = vector.load %arg1[%c0, %c0_0] : memref<8x256xf32, #tpu.memory_space<vmem>>, vector<8x256xf32>
    %c0_1 = arith.constant 0 : index
    %c0_2 = arith.constant 0 : index
    %1 = vector.load %arg2[%c0_1, %c0_2] : memref<1x256xi32, #tpu.memory_space<vmem>>, vector<1x256xi32>
    %c0_i32 = arith.constant 0 : i32
    %2 = vector.broadcast %c0_i32 : i32 to vector<1x256xi32>
    %3 = arith.cmpi ne, %1, %2 : vector<1x256xi32>
    %c255_i32 = arith.constant 255 : i32
    %4 = tpu.dynamic_rotate %0 by %c255_i32 dim 1 : vector<8x256xf32>, i32 -> vector<8x256xf32>
    %5 = vector.shape_cast %3 : vector<1x256xi1> to vector<1x256xi1>
    %6 = vector.broadcast %5 : vector<1x256xi1> to vector<8x256xi1>
    %7 = arith.select %6, %0, %4 : vector<8x256xi1>, vector<8x256xf32>
    %8 = arith.maximumf %0, %7 : vector<8x256xf32>
    %c0_3 = arith.constant 0 : index
    %c0_4 = arith.constant 0 : index
    %9 = vector.load %arg3[%c0_3, %c0_4] : memref<1x256xi32, #tpu.memory_space<vmem>>, vector<1x256xi32>
    %c0_i32_5 = arith.constant 0 : i32
    %10 = vector.broadcast %c0_i32_5 : i32 to vector<1x256xi32>
    %11 = arith.cmpi ne, %9, %10 : vector<1x256xi32>
    %c240_i32 = arith.constant 240 : i32
    %12 = tpu.dynamic_rotate %8 by %c240_i32 dim 1 : vector<8x256xf32>, i32 -> vector<8x256xf32>
    %13 = vector.shape_cast %11 : vector<1x256xi1> to vector<1x256xi1>
    %14 = vector.broadcast %13 : vector<1x256xi1> to vector<8x256xi1>
    %15 = arith.select %14, %8, %12 : vector<8x256xi1>, vector<8x256xf32>
    %16 = arith.maximumf %8, %15 : vector<8x256xf32>
    %c0_6 = arith.constant 0 : index
    %c0_7 = arith.constant 0 : index
    %17 = vector.load %arg4[%c0_6, %c0_7] : memref<8x256xf32, #tpu.memory_space<vmem>>, vector<8x256xf32>
    tpu.vector_store %arg4[%c0_6, %c0_7], %16 {strides = array<i32>} : memref<8x256xf32, #tpu.memory_space<vmem>>, vector<8x256xf32>,
    return
  }
  func.func @transform_0(%arg0: i32) -> (i32, i32) {
    %c0_i32 = arith.constant 0 : i32
    %c0_i32_0 = arith.constant 0 : i32
    return %arg0, %c0_i32 : i32, i32
  }
  func.func @transform_1(%arg0: i32) -> (i32, i32) {
    %c0_i32 = arith.constant 0 : i32
    %c0_i32_0 = arith.constant 0 : i32
    %c0_i32_1 = arith.constant 0 : i32
    return %c0_i32, %c0_i32_0 : i32, i32
  }
  func.func @transform_2(%arg0: i32) -> (i32, i32) {
    %c0_i32 = arith.constant 0 : i32
    %c0_i32_0 = arith.constant 0 : i32
    %c0_i32_1 = arith.constant 0 : i32
    return %c0_i32, %c0_i32_0 : i32, i32
  }
  func.func @transform_3(%arg0: i32) -> (i32, i32) {
    %c0_i32 = arith.constant 0 : i32
    %c0_i32_0 = arith.constant 0 : i32
    return %arg0, %c0_i32 : i32, i32
  }
}

</mosaic_0001>

<llo_original>
// kernel: tpu_custom_call.1
$region0: #{tpu_custom_call.1}
  #allocation0 [shape = 'u32[]', space=smem, size = 0x4, offset = 0x4, fixed_abs, tag = 'smem constant byte address 0x4 - core index']
  #allocation1 [shape = 'u32[144,128]{1,0:T(1,128)}', space=vmem, size = 0x12000, scoped, tag = 'internal scratch']
  %s0 = inlined_call_operand.hbm [shape: f32[8,256], index: 0, kind: input, shape index: {}]
  %s1 = inlined_call_operand.hbm [shape: s32[1,256], index: 1, kind: input, shape index: {}]
  %s2 = inlined_call_operand.vmem [shape: s32[1,256], index: 2, kind: input, shape index: {}]
  %s3 = inlined_call_operand.hbm [shape: f32[8,256], index: 3, kind: output, shape index: {}]
  %s4 = sld [smem:[#allocation0]]
  $region30: #{tpu_custom_call.1} parent=0
    _
  %s6 = ssub.s32 1, %s4
  %s7 = scalar_select 0, %s6, %s4
  $region1: #{tpu_custom_call.1} parent=0
    #allocation2 [shape = 'u8[8192]{0}', space=vmem, size = 0x2000, scoped, tag = 'input window, operand 0, single buffered']
    #allocation3 [shape = 's32[1]{0}', space=sflag, size = 0x4, scoped, tag = 'scoped memory for tpu_custom_call.1']
    #allocation4 [shape = 's32[1]{0}', space=sflag, size = 0x4, scoped, tag = 'scoped memory for tpu_custom_call.1']
    #allocation5 [shape = 'u8[1024]{0}', space=vmem, size = 0x400, scoped, tag = 'input window, operand 1, single buffered']
    #allocation6 [shape = 's32[1]{0}', space=sflag, size = 0x4, scoped, tag = 'scoped memory for tpu_custom_call.1']
    #allocation7 [shape = 'u8[8192]{0}', space=vmem, size = 0x2000, scoped, tag = 'output window, operand 0, single buffered']
    %8 = vsyncpa [#allocation3], 0
    %9 = vsyncpa [#allocation6], 0
    %10 = vsyncpa [#allocation4], 0
    // Predicated region
    $region2: #{tpu_custom_call.1} parent=1 // pred_check
      _
    $region3: #{tpu_custom_call.1} parent=1 // pred_check_branch
      %12 = sbr.rel (0) target = $region5
    $region4: #{tpu_custom_call.1} parent=1 // pred_region
      %s14 = ssub.s32 256, 256
      %15 = vsyncadd [#allocation3], %s14
      %s17 = sshll.u32 [#allocation2], 4
      %s18 = int_to_ptr.vmem [resolvable:$true] %s17
      %20 = dma.hbm_to_vmem [thread:$0]  %s0, 256, %s18, [#allocation3]
    $region5: #{tpu_custom_call.1} parent=1 // pred_fallthru
      _
    // Predicated region
    $region6: #{tpu_custom_call.1} parent=1 // pred_check
      _
    $region7: #{tpu_custom_call.1} parent=1 // pred_check_branch
      %22 = sbr.rel (0) target = $region9
    $region8: #{tpu_custom_call.1} parent=1 // pred_region
      %s24 = ssub.s32 32, 32
      %25 = vsyncadd [#allocation6], %s24
      %s27 = sshll.u32 [#allocation5], 4
      %s28 = int_to_ptr.vmem [resolvable:$true] %s27
      %30 = dma.hbm_to_vmem [thread:$0]  %s1, 32, %s28, [#allocation6]
    $region9: #{tpu_custom_call.1} parent=1 // pred_fallthru
      _
    // Predicated region
    $region10: #{tpu_custom_call.1} parent=1 // pred_check
      _
    $region11: #{tpu_custom_call.1} parent=1 // pred_check_branch
      %32 = sbr.rel (0) target = $region13
    $region12: #{tpu_custom_call.1} parent=1 // pred_region
      _
    $region13: #{tpu_custom_call.1} parent=1 // pred_fallthru
      _
    // Predicated region
    $region14: #{tpu_custom_call.1} parent=1 // pred_check
      _
    $region15: #{tpu_custom_call.1} parent=1 // pred_check_branch
      %34 = sbr.rel (0) target = $region17
    $region16: #{tpu_custom_call.1} parent=1 // pred_region
      %35 = dma.done [#allocation3], 256
    $region17: #{tpu_custom_call.1} parent=1 // pred_fallthru
      _
    // Predicated region
    $region18: #{tpu_custom_call.1} parent=1 // pred_check
      _
    $region19: #{tpu_custom_call.1} parent=1 // pred_check_branch
      %37 = sbr.rel (0) target = $region21
    $region20: #{tpu_custom_call.1} parent=1 // pred_region
      %38 = dma.done [#allocation6], 32
    $region21: #{tpu_custom_call.1} parent=1 // pred_fallthru
      _
    %v39 = vld [vmem:[#allocation2] sm:$0xff]
    %v40 = vld [vmem:[#allocation2 + $0x8] sm:$0xff]
    %v41 = vld [vmem:[#allocation5] sm:$0x3]
    %vm42 = vcmp.ne.s32.totalorder %v41, 0
    %43 = vrot.lane.b32.xlu0 %v39, 127
    %v44 = vpop.permute.xlu0 %43
    %45 = vrot.lane.b32.xlu0 %v40, 127
    %v46 = vpop.permute.xlu0 %45
    %v47 = vlaneseq
    %v48 = vand.u32 %v47, 127
    %vm49 = vcmp.lt.s32.totalorder %v48, 127
    %v50 = vsel %vm49, %v44, %v46
    %v51 = vsel %vm49, %v46, %v44
    %v52 = vsel %vm42, 1, 0
    %v53 = vlaneseq
    %v54 = vshrl.u32 %v53, 7
    %v55 = vsub.s32 0, %v54
    %v56 = vrot.slane %v52, %v55
    %v57 = vlaneseq
    %v58 = vshrl.u32 %v57, 7
    %v59 = vsub.s32 1, %v58
    %v60 = vrot.slane %v52, %v59
    %vm61 = vcmp.eq.s32.totalorder %v56, 1
    %vm62 = vcmp.eq.s32.totalorder %v60, 1
    %v63 = vsel %vm61, %v39, %v50
    %v64 = vsel %vm62, %v40, %v51
    %v65 = vmax.f32 %v39, %v63
    %v66 = vmax.f32 %v40, %v64
    %v67 = vld [vmem:[%s2] sm:$0x3]
    %vm68 = vcmp.ne.s32.totalorder %v67, 0
    %69 = vrot.lane.b32.xlu0 %v65, 112
    %v70 = vpop.permute.xlu0 %69
    %71 = vrot.lane.b32.xlu0 %v66, 112
    %v72 = vpop.permute.xlu0 %71
    %vm73 = vcmp.lt.s32.totalorder %v48, 112
    %v74 = vsel %vm73, %v70, %v72
    %v75 = vsel %vm73, %v72, %v70
    %v76 = vsel %vm68, 1, 0
    %v77 = vlaneseq
    %v78 = vshrl.u32 %v77, 7
    %v79 = vsub.s32 0, %v78
    %v80 = vrot.slane %v76, %v79
    %v81 = vlaneseq
    %v82 = vshrl.u32 %v81, 7
    %v83 = vsub.s32 1, %v82
    %v84 = vrot.slane %v76, %v83
    %vm85 = vcmp.eq.s32.totalorder %v80, 1
    %vm86 = vcmp.eq.s32.totalorder %v84, 1
    %v87 = vsel %vm85, %v65, %v74
    %v88 = vsel %vm86, %v66, %v75
    %v89 = vmax.f32 %v65, %v87
    %v90 = vmax.f32 %v66, %v88
    %91 = vst [vmem:[#allocation7] sm:$0xff] %v89
    %92 = vst [vmem:[#allocation7 + $0x8] sm:$0xff] %v90
    // Predicated region
    $region22: #{tpu_custom_call.1} parent=1 // pred_check
      _
    $region23: #{tpu_custom_call.1} parent=1 // pred_check_branch
      %94 = sbr.rel (0) target = $region25
    $region24: #{tpu_custom_call.1} parent=1 // pred_region
      %s96 = ssub.s32 256, 256
      %97 = vsyncadd [#allocation4], %s96
      %s99 = sshll.u32 [#allocation7], 4
      %s100 = int_to_ptr.vmem [resolvable:$true] %s99
      %102 = dma.vmem_to_hbm [thread:$0]  %s100, 256, %s3, [#allocation4]
    $region25: #{tpu_custom_call.1} parent=1 // pred_fallthru
      _
    // Predicated region
    $region26: #{tpu_custom_call.1} parent=1 // pred_check
      _
    $region27: #{tpu_custom_call.1} parent=1 // pred_check_branch
      %104 = sbr.rel (0) target = $region29
    $region28: #{tpu_custom_call.1} parent=1 // pred_region
      %105 = dma.done [#allocation4], 256
    $region29: #{tpu_custom_call.1} parent=1 // pred_fallthru
      _
    %106 = vsyncpa [#allocation3], 1
    %107 = vsyncpa [#allocation6], 1
    %108 = vsyncpa [#allocation4], 1

</llo_original>
